<compile_context>
chip_gen: v7x
topology: tpu7x:2x2x1
jax: 0.10.0
libtpu: 0.0.40
codegen_flags: <defaults>
</compile_context>

<pallas_src>
import math

import jax
import jax.numpy as jnp
from jax import lax
from jax.experimental import pallas as pl
from jax.experimental.pallas import tpu as pltpu


def _round_up(x, m):
    return ((x + m - 1) // m) * m


def _vmem_caps():
    """Returns (vmem_limit_bytes cap, working-set budget) per TPU generation."""
    try:
        cap = int(getattr(pltpu.get_tpu_info(), "vmem_capacity_bytes", 64 << 20))
    except Exception:
        cap = 64 << 20  # conservative (v7x-sized) default
    if cap >= (96 << 20):          # v5e / v6e: 128 MiB physical VMEM
        return (100 << 20, 80 << 20)
    # v7x: 64 MiB physical per TensorCore -- leave headroom for Mosaic scratch
    return (48 << 20, 28 << 20)


# ---------------------------------------------------------------------------
# Small-vocab path: one-hot matmul on the MXU.
# ---------------------------------------------------------------------------

def _onehot_kernel_et(idx_ref, w_ref, o_ref):
    # idx_ref: (1, 1, tn) int32 lane-major indices; w_ref: (V, E); o_ref: (E, tn)
    idx = idx_ref[0]                                        # (1, tn)
    V = w_ref.shape[0]
    tn = idx.shape[1]
    iota = lax.broadcasted_iota(jnp.int32, (V, tn), 0)      # vocab on sublanes
    onehot = (iota == idx).astype(w_ref.dtype)              # (V, tn)
    # (E, tn) = W^T @ onehot, contracting the vocab axis (MXU, f32 accumulate).
    o_ref[...] = lax.dot_general(
        w_ref[...], onehot,
        dimension_numbers=(((0,), (0,)), ((), ())),
        preferred_element_type=jnp.float32,
    ).astype(o_ref.dtype)


def _onehot_kernel_te(idx_ref, w_ref, o_ref):
    # Direct (tn, E) output when E is lane-aligned -- no wrapper transpose.
    idx = idx_ref[0]                                        # (1, tn)
    V = w_ref.shape[0]
    tn = idx.shape[1]
    iota = lax.broadcasted_iota(jnp.int32, (V, tn), 0)
    onehot = (iota == idx).astype(w_ref.dtype)              # (V, tn)
    o_ref[...] = lax.dot_general(
        onehot, w_ref[...],
        dimension_numbers=(((0,), (0,)), ((), ())),
        preferred_element_type=jnp.float32,
    ).astype(o_ref.dtype)


# ---------------------------------------------------------------------------
# Large-vocab path: scalar-prefetch row gather (table row selected in the
# BlockSpec index_map from the prefetched SMEM index array).
# ---------------------------------------------------------------------------

def _gather_row_kernel(idx_ref, w_row_ref, o_ref):
    del idx_ref  # indices are consumed by the BlockSpec index_maps
    o_ref[...] = w_row_ref[...]


def _embedding_rowgather(idx_flat, weight, out_shape3):
    N = idx_flat.shape[0]
    V, E = weight.shape
    itemsize = jnp.dtype(weight.dtype).itemsize
    ce = pl.CostEstimate(
        flops=0,
        transcendentals=0,
        bytes_accessed=2 * N * E * itemsize + N * 4,
    )
    out = pl.pallas_call(
        _gather_row_kernel,
        out_shape=jax.ShapeDtypeStruct((N, E), weight.dtype),
        grid_spec=pltpu.PrefetchScalarGridSpec(
            num_scalar_prefetch=1,
            grid=(N,),
            in_specs=[pl.BlockSpec((1, E), lambda i, idx: (idx[i], 0))],
            out_specs=pl.BlockSpec((1, E), lambda i, idx: (i, 0)),
        ),
        compiler_params=pltpu.CompilerParams(
            dimension_semantics=("arbitrary",),
        ),
        cost_estimate=ce,
    )(idx_flat, weight)
    return out.reshape(out_shape3)


# ---------------------------------------------------------------------------
# Dispatcher / wrapper (PyTorch Embedding.forward equivalent).
# ---------------------------------------------------------------------------

def embedding_lookup(x, weight, *, tn=1024, onehot_max_vocab=1024):
    """x: int (B, F); weight: (V, E) float -> (B, F, E) in weight.dtype.

    Note: out-of-range indices produce all-zero rows on the one-hot path
    (nn.Embedding would raise); inputs are assumed to lie in [0, V).
    """
    B, F = x.shape
    V, E = weight.shape
    N = B * F
    itemsize = jnp.dtype(weight.dtype).itemsize
    idx_flat = x.reshape(-1).astype(jnp.int32)

    limit_cap, work_budget = _vmem_caps()

    # tn must be a multiple of 128 (lane width); shrink for tiny problems.
    tn = max(128, (tn // 128) * 128)
    tn = min(tn, _round_up(N, 128))

    # One-hot working set: table (double-buffered blocks), (V, tn) iota/one-hot
    # intermediates, and double-buffered index / output blocks.
    def _vmem_need(t):
        tbl = 2 * V * E * itemsize
        onehot = 2 * V * t * 4
        blk = 2 * (t * 4 + E * t * itemsize)
        return tbl + onehot + blk

    while tn > 128 and _vmem_need(tn) > work_budget:
        tn -= 128

    use_onehot = (V <= onehot_max_vocab) and (_vmem_need(tn) <= work_budget)
    if not use_onehot:
        # Large vocabulary (or table does not fit in VMEM): row gather keeps
        # the table in HBM and moves only the addressed rows, O(N*E) bytes.
        return _embedding_rowgather(idx_flat, weight, (B, F, E))

    N_pad = _round_up(N, tn)
    n_tiles = N_pad // tn
    if N_pad != N:
        # Padded slots gather row 0 and are sliced away below.
        idx_flat = jnp.pad(idx_flat, (0, N_pad - N))
    idx_tiles = idx_flat.reshape(n_tiles, 1, tn)

    vmem_limit = int(min(max(_vmem_need(tn) + (4 << 20), 16 << 20), limit_cap))
    ce = pl.CostEstimate(
        flops=2 * N_pad * V * E,
        transcendentals=0,
        bytes_accessed=V * E * itemsize + N_pad * 4 + N_pad * E * itemsize,
    )
    cparams = pltpu.CompilerParams(
        dimension_semantics=("parallel",),
        vmem_limit_bytes=vmem_limit,
    )

    if E % 128 == 0:
        # Lane-aligned E: write (N_pad, E) directly, no wrapper transpose.
        out = pl.pallas_call(
            _onehot_kernel_te,
            out_shape=jax.ShapeDtypeStruct((N_pad, E), weight.dtype),
            grid_spec=pltpu.PrefetchScalarGridSpec(
                num_scalar_prefetch=0,
                grid=(n_tiles,),
                in_specs=[
                    pl.BlockSpec((1, 1, tn), lambda i: (i, 0, 0)),  # lane-major idx
                    pl.BlockSpec((V, E), lambda i: (0, 0)),         # full table
                ],
                out_specs=pl.BlockSpec((tn, E), lambda i: (i, 0)),
            ),
            compiler_params=cparams,
            cost_estimate=ce,
        )(idx_tiles, weight)
        return out[:N].reshape(B, F, E)

    # Small E (< 128 lanes): lane-dense (E, tn) tile so every store uses full
    # lanes; single cheap transpose/slice in the wrapper.
    out_t = pl.pallas_call(
        _onehot_kernel_et,
        out_shape=jax.ShapeDtypeStruct((E, N_pad), weight.dtype),
        grid_spec=pltpu.PrefetchScalarGridSpec(
            num_scalar_prefetch=0,
            grid=(n_tiles,),
            in_specs=[
                pl.BlockSpec((1, 1, tn), lambda i: (i, 0, 0)),   # lane-major idx
                pl.BlockSpec((V, E), lambda i: (0, 0)),          # full table
            ],
            out_specs=pl.BlockSpec((E, tn), lambda i: (0, i)),   # lane-dense out
        ),
        compiler_params=cparams,
        cost_estimate=ce,
    )(idx_tiles, weight)
    return out_t[:, :N].T.reshape(B, F, E)


def xavier_uniform(key, shape, dtype=jnp.float32):
    fan_in, fan_out = shape[0], shape[1]
    bound = math.sqrt(6.0 / (fan_in + fan_out))
    return jax.random.uniform(key, shape, dtype=dtype, minval=-bound, maxval=bound)


if __name__ == "__main__":
    key = jax.random.PRNGKey(0)
    k_w, k_x, k_w2, k_x2 = jax.random.split(key, 4)

    # Module-sized example: small vocab -> one-hot-on-MXU path.
    num_feat = 64    # vocabulary of medical features
    hidden_dim = 32  # embedding size
    B, F = 2, 8      # batch, features-per-sample

    weight = xavier_uniform(k_w, (num_feat, hidden_dim))   # nn.Embedding.weight
    x = jax.random.randint(k_x, (B, F), 0, num_feat, dtype=jnp.int32)

    emb = jax.block_until_ready(embedding_lookup(x, weight))
    ref = jnp.take(weight, x.reshape(-1), axis=0).reshape(B, F, hidden_dim)
    assert emb.shape == (B, F, hidden_dim)
    assert jnp.allclose(emb, ref, atol=1e-6, rtol=1e-6)

    # Large-vocab example: exercises the scalar-prefetch row-gather path.
    big_vocab = 4096
    weight2 = xavier_uniform(k_w2, (big_vocab, hidden_dim))
    x2 = jax.random.randint(k_x2, (B, F), 0, big_vocab, dtype=jnp.int32)

    emb2 = jax.block_until_ready(embedding_lookup(x2, weight2))
    ref2 = jnp.take(weight2, x2.reshape(-1), axis=0).reshape(B, F, hidden_dim)
    assert emb2.shape == (B, F, hidden_dim)
    assert jnp.allclose(emb2, ref2, atol=1e-6, rtol=1e-6)

    print("KERNEL_OK")
</pallas_src>

<mosaic_0001>
module attributes {stable_mosaic.version = 11 : i64} {
  func.func @_onehot_kernel_et(%arg0: i32, %arg1: memref<1x1x128xi32, #tpu.memory_space<vmem>>, %arg2: memref<64x32xf32, #tpu.memory_space<vmem>>, %arg3: memref<32x128xf32, #tpu.memory_space<vmem>>) attributes {dimension_semantics = [#tpu.dimension_semantics<parallel>], iteration_bounds = array<i64: 1>, scalar_prefetch = 0 : i64, scratch_operands = 0 : i64, tpu.core_type = #tpu.core_type<tc>, window_params = [{transform_indices = @transform_0, window_bounds = array<i64: 1, 1, 128>}, {pipeline_mode = #tpu.pipeline_mode<synchronous>, transform_indices = @transform_1, window_bounds = array<i64: 64, 32>}, {transform_indices = @transform_2, window_bounds = array<i64: 32, 128>}]} {
    %c0 = arith.constant 0 : index
    %c0_0 = arith.constant 0 : index
    %c0_1 = arith.constant 0 : index
    %0 = vector.load %arg1[%c0, %c0_0, %c0_1] : memref<1x1x128xi32, #tpu.memory_space<vmem>>, vector<1x1x128xi32>
    %1 = vector.shape_cast %0 : vector<1x1x128xi32> to vector<1x128xi32>
    %2 = tpu.iota {dimensions = array<i32: 0>} : vector<64x128xi32>
    %3 = vector.broadcast %1 : vector<1x128xi32> to vector<64x128xi32>
    %4 = arith.cmpi eq, %2, %3 : vector<64x128xi32>
    %5 = arith.extui %4 : vector<64x128xi1> to vector<64x128xi32>
    %6 = arith.sitofp %5 : vector<64x128xi32> to vector<64x128xf32>
    %c0_2 = arith.constant 0 : index
    %c0_3 = arith.constant 0 : index
    %7 = vector.load %arg2[%c0_2, %c0_3] : memref<64x32xf32, #tpu.memory_space<vmem>>, vector<64x32xf32>
    %cst = arith.constant dense<0.000000e+00> : vector<32x128xf32>
    %8 = tpu.matmul %7, %6, %cst {dimension_numbers = #tpu.dot_dimension_numbers<[0], [0], [1], [1], [0, 1, 1, 1], [], []>} : vector<64x32xf32>, vector<64x128xf32>, vector<32x128xf32> -> vector<32x128xf32>
    %c0_4 = arith.constant 0 : index
    %c0_5 = arith.constant 0 : index
    %9 = vector.load %arg3[%c0_4, %c0_5] : memref<32x128xf32, #tpu.memory_space<vmem>>, vector<32x128xf32>
    tpu.vector_store %arg3[%c0_4, %c0_5], %8 {strides = array<i32>} : memref<32x128xf32, #tpu.memory_space<vmem>>, vector<32x128xf32>,
    return
  }
  func.func @transform_0(%arg0: i32) -> (i32, i32, i32) {
    %c0_i32 = arith.constant 0 : i32
    %c0_i32_0 = arith.constant 0 : i32
    %c0_i32_1 = arith.constant 0 : i32
    return %arg0, %c0_i32, %c0_i32_0 : i32, i32, i32
  }
  func.func @transform_1(%arg0: i32) -> (i32, i32) {
    %c0_i32 = arith.constant 0 : i32
    %c0_i32_0 = arith.constant 0 : i32
    %c0_i32_1 = arith.constant 0 : i32
    return %c0_i32, %c0_i32_0 : i32, i32
  }
  func.func @transform_2(%arg0: i32) -> (i32, i32) {
    %c0_i32 = arith.constant 0 : i32
    %c0_i32_0 = arith.constant 0 : i32
    return %c0_i32, %arg0 : i32, i32
  }
}

</mosaic_0001>

<llo_original>
// kernel: tpu_custom_call.1
$region0: #{tpu_custom_call.1}
  #allocation0 [shape = 'u32[]', space=smem, size = 0x4, offset = 0x4, fixed_abs, tag = 'smem constant byte address 0x4 - core index']
  #allocation1 [shape = 'u32[144,128]{1,0:T(1,128)}', space=vmem, size = 0x12000, scoped, tag = 'internal scratch']
  %s0 = inlined_call_operand.vmem [shape: s32[1,1,128], index: 0, kind: input, shape index: {}]
  %s1 = inlined_call_operand.vmem [shape: f32[64,32], index: 1, kind: input, shape index: {}]
  %s2 = inlined_call_operand.hbm [shape: f32[32,128], index: 2, kind: output, shape index: {}]
  %s3 = sld [smem:[#allocation0]]
  $region18: #{tpu_custom_call.1} parent=0
    _
  %s5 = ssub.s32 1, %s3
  %s6 = scalar_select 0, %s5, %s3
  $region1: #{tpu_custom_call.1} parent=0
    #allocation2 [shape = 'u8[16384]{0}', space=vmem, size = 0x4000, scoped, tag = 'output window, operand 0, single buffered']
    #allocation3 [shape = 's32[1]{0}', space=sflag, size = 0x4, scoped, tag = 'scoped memory for tpu_custom_call.1']
    %7 = vsyncpa [#allocation3], 0
    // Predicated region
    $region2: #{tpu_custom_call.1} parent=1 // pred_check
      _
    $region3: #{tpu_custom_call.1} parent=1 // pred_check_branch
      %9 = sbr.rel (0) target = $region5
    $region4: #{tpu_custom_call.1} parent=1 // pred_region
      _
    $region5: #{tpu_custom_call.1} parent=1 // pred_fallthru
      _
    // Predicated region
    $region6: #{tpu_custom_call.1} parent=1 // pred_check
      _
    $region7: #{tpu_custom_call.1} parent=1 // pred_check_branch
      %11 = sbr.rel (0) target = $region9
    $region8: #{tpu_custom_call.1} parent=1 // pred_region
      _
    $region9: #{tpu_custom_call.1} parent=1 // pred_fallthru
      _
    %v12 = vld [vmem:[%s0] sm:$0x1]
    %v13 = vlaneseq
    %v14 = vshrl.u32 %v13, 7
    %v15 = vadd.s32 %v14, 8
    %v16 = vadd.s32 %v14, 16
    %v17 = vadd.s32 %v14, 24
    %v18 = vadd.s32 %v14, 32
    %v19 = vadd.s32 %v14, 40
    %v20 = vadd.s32 %v14, 48
    %v21 = vadd.s32 %v14, 56
    %v22 = vlaneseq
    %v23 = vshrl.u32 %v22, 7
    %v24 = vsub.s32 0, %v23
    %v25 = vrot.slane %v12, %v24
    %vm26 = vcmp.eq.s32.totalorder %v14, %v25
    %vm27 = vcmp.eq.s32.totalorder %v15, %v25
    %vm28 = vcmp.eq.s32.totalorder %v16, %v25
    %vm29 = vcmp.eq.s32.totalorder %v17, %v25
    %vm30 = vcmp.eq.s32.totalorder %v18, %v25
    %vm31 = vcmp.eq.s32.totalorder %v19, %v25
    %vm32 = vcmp.eq.s32.totalorder %v20, %v25
    %vm33 = vcmp.eq.s32.totalorder %v21, %v25
    %v34 = vsel %vm26, 1, 0
    %v35 = vsel %vm27, 1, 0
    %v36 = vsel %vm28, 1, 0
    %v37 = vsel %vm29, 1, 0
    %v38 = vsel %vm30, 1, 0
    %v39 = vsel %vm31, 1, 0
    %v40 = vsel %vm32, 1, 0
    %v41 = vsel %vm33, 1, 0
    %v42 = vcvt.s32.f32 %v34
    %v43 = vcvt.s32.f32 %v35
    %v44 = vcvt.s32.f32 %v36
    %v45 = vcvt.s32.f32 %v37
    %v46 = vcvt.s32.f32 %v38
    %v47 = vcvt.s32.f32 %v39
    %v48 = vcvt.s32.f32 %v40
    %v49 = vcvt.s32.f32 %v41
    %v50 = vld [vmem:[%s1] sm:$0xff]
    %v51 = vld [vmem:[%s1 + $0x8] sm:$0xff]
    %v52 = vld [vmem:[%s1 + $0x10] sm:$0xff]
    %v53 = vld [vmem:[%s1 + $0x18] sm:$0xff]
    %v54 = vld [vmem:[%s1 + $0x20] sm:$0xff]
    %v55 = vld [vmem:[%s1 + $0x28] sm:$0xff]
    %v56 = vld [vmem:[%s1 + $0x30] sm:$0xff]
    %v57 = vld [vmem:[%s1 + $0x38] sm:$0xff]
    %58 = vxpose.xlu0.b32.start [1/16] %v50, 128
    %59 = vxpose.xlu0.b32.cont [2/16] %v51, 128
    %60 = vxpose.xlu0.b32.cont [3/16] %v52, 128
    %61 = vxpose.xlu0.b32.cont [4/16] %v53, 128
    %62 = vxpose.xlu0.b32.cont [5/16] %v54, 128
    %63 = vxpose.xlu0.b32.cont [6/16] %v55, 128
    %64 = vxpose.xlu0.b32.cont [7/16] %v56, 128
    %65 = vxpose.xlu0.b32.cont [8/16] %v57, 128
    %66 = vxpose.xlu0.b32.cont [9/16] 0.0, 128
    %67 = vxpose.xlu0.b32.cont [10/16] 0.0, 128
    %68 = vxpose.xlu0.b32.cont [11/16] 0.0, 128
    %69 = vxpose.xlu0.b32.cont [12/16] 0.0, 128
    %70 = vxpose.xlu0.b32.cont [13/16] 0.0, 128
    %71 = vxpose.xlu0.b32.cont [14/16] 0.0, 128
    %72 = vxpose.xlu0.b32.cont [15/16] 0.0, 128
    %73 = vxpose.xlu0.b32.end [16/16] 0.0, 128
    %v74 = vpop.trf.xlu0
    %v75 = vpop.trf.xlu0
    %v76 = vpop.trf.xlu0
    %v77 = vpop.trf.xlu0
    %v78 = vpop.trf.xlu0
    %v79 = vpop.trf.xlu0
    %v80 = vpop.trf.xlu0
    %v81 = vpop.trf.xlu0
    %v82 = vpop.trf.xlu0
    %v83 = vpop.trf.xlu0
    %v84 = vpop.trf.xlu0
    %v85 = vpop.trf.xlu0
    %v86 = vpop.trf.xlu0
    %v87 = vpop.trf.xlu0
    %v88 = vpop.trf.xlu0
    %v89 = vpop.trf.xlu0
    %vm90 = vcmask 523264
    %v92 = vsel %vm90, %v74, 0
    %v95 = vsel %vm90, %v75, 0
    %v98 = vsel %vm90, %v76, 0
    %v101 = vsel %vm90, %v77, 0
    %103 = vmatprep.subr.mxu0 0.0
    %104 = vmatpush1.msra.mxu0 %v42
    %105 = vmatprep.subr.mxu0 0.0
    %106 = vmatpush1.msra.mxu0 %v43
    %107 = vmatprep.subr.mxu0 0.0
    %108 = vmatpush1.msra.mxu0 %v44
    %109 = vmatprep.subr.mxu0 0.0
    %110 = vmatpush1.msra.mxu0 %v45
    %111 = vmatprep.subr.mxu0 0.0
    %112 = vmatpush1.msra.mxu0 %v46
    %113 = vmatprep.subr.mxu0 0.0
    %114 = vmatpush1.msra.mxu0 %v47
    %115 = vmatprep.subr.mxu0 0.0
    %116 = vmatpush1.msra.mxu0 %v48
    %117 = vmatprep.subr.mxu0 0.0
    %118 = vmatpush1.msra.mxu0 %v49
    %119 = vmatprep.subr.mxu0 0.0
    %120 = vmatpush1.msra.mxu0 0.0
    %121 = vmatprep.subr.mxu0 0.0
    %122 = vmatpush1.msra.mxu0 0.0
    %123 = vmatprep.subr.mxu0 0.0
    %124 = vmatpush1.msra.mxu0 0.0
    %125 = vmatprep.subr.mxu0 0.0
    %126 = vmatpush1.msra.mxu0 0.0
    %127 = vmatprep.subr.mxu0 0.0
    %128 = vmatpush1.msra.mxu0 0.0
    %129 = vmatprep.subr.mxu0 0.0
    %130 = vmatpush1.msra.mxu0 0.0
    %131 = vmatprep.subr.mxu0 0.0
    %132 = vmatpush1.msra.mxu0 0.0
    %133 = vmatprep.subr.mxu0 0.0
    %134 = vmatpush1.msra.mxu0 0.0
    %135 = vmatprep.subr.mxu0 0.0
    %136 = vmatpush1.msra.mxu0 0.0
    %137 = vmatprep.subr.mxu0 0.0
    %138 = vmatpush1.msra.mxu0 0.0
    %139 = vmatprep.subr.mxu0 0.0
    %140 = vmatpush1.msra.mxu0 0.0
    %141 = vmatprep.subr.mxu0 0.0
    %142 = vmatpush1.msra.mxu0 0.0
    %143 = vmatprep.subr.mxu0 0.0
    %144 = vmatpush1.msra.mxu0 0.0
    %145 = vmatprep.subr.mxu0 0.0
    %146 = vmatpush1.msra.mxu0 0.0
    %147 = vmatprep.subr.mxu0 0.0
    %148 = vmatpush1.msra.mxu0 0.0
    %149 = vmatprep.subr.mxu0 0.0
    %150 = vmatpush1.msra.mxu0 0.0
    %151 = vmatprep.subr.mxu0 0.0
    %152 = vmatpush1.msra.mxu0 0.0
    %153 = vmatprep.subr.mxu0 0.0
    %154 = vmatpush1.msra.mxu0 0.0
    %155 = vmatprep.subr.mxu0 0.0
    %156 = vmatpush1.msra.mxu0 0.0
    %157 = vmatprep.subr.mxu0 0.0
    %158 = vmatpush1.msra.mxu0 0.0
    %159 = vmatprep.subr.mxu0 0.0
    %160 = vmatpush1.msra.mxu0 0.0
    %161 = vmatprep.subr.mxu0 0.0
    %162 = vmatpush1.msra.mxu0 0.0
    %163 = vmatprep.subr.mxu0 0.0
    %164 = vmatpush1.msra.mxu0 0.0
    %165 = vmatprep.subr.mxu0 0.0
    %166 = vmatpush1.msra.mxu0 0.0
    %167 = vmatprep.mubr.f32.mxu0 0.0
    %168 = vmatmul.mubr.f32.gmra.mrb[0].mxu0 %v92
    %v169 = vpop.f32.mrb[0].mxu0
    %v170 = vadd.f32 0.0, %v169
    %v171 = vpop.f32.mrb[0].mxu0
    %172 = vmatprep.mubr.f32.mxu0 0.0
    %173 = vmatmul.mubr.f32.gmra.mrb[0].mxu0 %v95
    %v174 = vpop.f32.mrb[0].mxu0
    %v175 = vadd.f32 0.0, %v174
    %v176 = vpop.f32.mrb[0].mxu0
    %177 = vmatprep.mubr.f32.mxu0 0.0
    %178 = vmatmul.mubr.f32.gmra.mrb[0].mxu0 %v98
    %v179 = vpop.f32.mrb[0].mxu0
    %v180 = vadd.f32 0.0, %v179
    %v181 = vpop.f32.mrb[0].mxu0
    %182 = vmatprep.mubr.f32.mxu0 0.0
    %183 = vmatmul.mubr.f32.gmra.mrb[0].mxu0 %v101
    %v184 = vpop.f32.mrb[0].mxu0
    %v185 = vadd.f32 0.0, %v184
    %v186 = vpop.f32.mrb[0].mxu0
    %187 = vdwg.mxu0
    %188 = vst [vmem:[#allocation2] sm:$0xff] %v170
    %189 = vst [vmem:[#allocation2 + $0x8] sm:$0xff] %v175
    %190 = vst [vmem:[#allocation2 + $0x10] sm:$0xff] %v180
    %191 = vst [vmem:[#allocation2 + $0x18] sm:$0xff] %v185
    // Predicated region
    $region10: #{tpu_custom_call.1} parent=1 // pred_check
      _
    $region11: #{tpu_custom_call.1} parent=1 // pred_check_branch
      %193 = sbr.rel (0) target = $region13
    $region12: #{tpu_custom_call.1} parent=1 // pred_region
      %s195 = ssub.s32 512, 512
      %196 = vsyncadd [#allocation3], %s195
      %s197 = sshll.u32 [#allocation2], 4
      %s198 = int_to_ptr.vmem [resolvable:$true] %s197
      %203 = dma.vmem_to_hbm [thread:$0]  %s198, 512, %s2, [#allocation3], 128, 128, 8
    $region13: #{tpu_custom_call.1} parent=1 // pred_fallthru
      _
    // Predicated region
    $region14: #{tpu_custom_call.1} parent=1 // pred_check
      _
    $region15: #{tpu_custom_call.1} parent=1 // pred_check_branch
      %205 = sbr.rel (0) target = $region17
    $region16: #{tpu_custom_call.1} parent=1 // pred_region
      %206 = dma.done [#allocation3], 512
    $region17: #{tpu_custom_call.1} parent=1 // pred_fallthru
      _
    %207 = vsyncpa [#allocation3], 1

</llo_original>
